<compile_context>
chip_gen: v6e
topology: v6e:2x2x1
jax: 0.10.0
libtpu: 0.0.40
codegen_flags: <defaults>
</compile_context>

<pallas_src>
import jax
import jax.numpy as jnp
from jax.experimental import pallas as pl
from jax.experimental.pallas import tpu as pltpu

# Default per-channel statistics from Normalizer.__init__ (9 channels).
_MEAN = [0.039798092, 0.23215543, 0.21487042, 0.12491968, 0.23842652,
         0.061436515, 0.024498232, 0.2339738, 0.014193709]
_STD = [0.032900818, 0.1462142, 0.15836369, 0.09872178, 0.14610584,
        0.056200337, 0.015856693, 0.14639099, 0.008545931]

_LANE = 128


def _round_up(x: int, m: int) -> int:
    return (x + m - 1) // m * m


def _padded_sublanes(c: int, dtype) -> int:
    # Sub-32-bit dtypes pack along sublanes: native sublane tile is
    # 8 * (4 // itemsize) rows (f32 -> 8, bf16 -> 16, int8/fp8 -> 32).
    itemsize = jnp.dtype(dtype).itemsize
    tile = 8 * max(1, 4 // itemsize)
    return _round_up(c, tile)


def _normalize_kernel(x_ref, mean_ref, inv_std_ref, o_ref):
    # x_ref: (Nb, C, T) VMEM tile; mean/inv_std: (1, C, 1) f32, broadcast over
    # the batch and spatial (lane) axes.  images[i].sub_(mean).div_(std) is
    # implemented as subtract-then-multiply-by-reciprocal (reciprocal
    # precomputed once per channel in the wrapper).
    x = x_ref[...].astype(jnp.float32)
    o_ref[...] = ((x - mean_ref[...]) * inv_std_ref[...]).astype(o_ref.dtype)


def normalizer_forward(images: jax.Array,
                       mean: jax.Array,
                       std: jax.Array,
                       *,
                       spatial_tile: int = 32768,
                       vmem_budget_bytes: int = 12 * 1024 * 1024):
    """Equivalent of Normalizer.forward.

    images: (N, C, H, W).  Returns (normalized_images, sizes) — the Pallas
    analogue of ImageList.
    """
    N, C, H, W = images.shape
    HW = H * W
    dtype = images.dtype
    itemsize = jnp.dtype(dtype).itemsize
    x = images.reshape(N, C, HW)

    # Stats stay in f32; fold 1/std once (O(C)=9 wrapper work, not a
    # per-element pre-scale of the image tensor).
    mean_b = mean.astype(jnp.float32).reshape(1, C, 1)
    inv_std_b = (1.0 / std.astype(jnp.float32)).reshape(1, C, 1)

    # Padded-VMEM accounting: C=9 rounds up to 16 sublanes (f32) and the lane
    # axis rounds up to a multiple of 128.
    c_pad = _padded_sublanes(C, dtype)
    hw_pad = _round_up(HW, _LANE)
    padded_total = N * c_pad * hw_pad * itemsize
    total_bytes = x.size * itemsize

    cost = pl.CostEstimate(flops=2 * x.size, transcendentals=0,
                           bytes_accessed=2 * total_bytes)

    # Pallas double-buffers every BlockSpec: 2 input + 2 output copies live.
    if 4 * padded_total <= vmem_budget_bytes:
        # Whole tensor fits VMEM comfortably: single grid step, one big block,
        # one DMA in / one DMA out.  All block dims equal the full array dims
        # -> legal regardless of (8,128) divisibility.
        grid = (1,)
        x_spec = pl.BlockSpec((N, C, HW), lambda i: (0, 0, 0))
        out_spec = pl.BlockSpec((N, C, HW), lambda i: (0, 0, 0))
        stat_spec = pl.BlockSpec((1, C, 1), lambda i: (0, 0, 0))
        dim_sem = ("arbitrary",)
    else:
        # Real-resolution path: lane-dense spatial tiles, one image per step on
        # the batch axis.  Per-step padded block = c_pad * T * itemsize; four
        # live copies (double-buffered in + out) must fit the budget.
        if HW <= _LANE:
            T = HW                      # tiny spatial dim: full extent, 1 tile
        else:
            t_budget = max(_LANE, vmem_budget_bytes // (4 * c_pad * itemsize))
            T = min(spatial_tile, t_budget, hw_pad)
            T = max(_LANE, (T // _LANE) * _LANE)
            if N == 1 and HW >= 2 * _LANE:
                # v7x megacore: keep >=2 spatial tiles so both TensorCores get
                # work when there is only one image.
                T = min(T, max(_LANE, (HW // 2 // _LANE) * _LANE))
        grid = (N, pl.cdiv(HW, T))
        x_spec = pl.BlockSpec((1, C, T), lambda n, s: (n, 0, s))
        out_spec = pl.BlockSpec((1, C, T), lambda n, s: (n, 0, s))
        stat_spec = pl.BlockSpec((1, C, 1), lambda n, s: (0, 0, 0))
        dim_sem = ("parallel", "parallel")

    out = pl.pallas_call(
        _normalize_kernel,
        out_shape=jax.ShapeDtypeStruct((N, C, HW), dtype),
        grid=grid,
        in_specs=[x_spec, stat_spec, stat_spec],
        out_specs=out_spec,
        input_output_aliases={0: 0},   # PyTorch semantics are in-place
        cost_estimate=cost,
        compiler_params=pltpu.CompilerParams(
            dimension_semantics=dim_sem,
            vmem_limit_bytes=32 * 1024 * 1024),
    )(x, mean_b, inv_std_b)

    out = out.reshape(N, C, H, W)
    # TODO(synk): ImageList container has no Pallas equivalent; return the
    # array plus the per-image spatial sizes as plain Python glue instead.
    sizes = [(H, W) for _ in range(N)]
    return out, sizes


if __name__ == "__main__":
    key = jax.random.PRNGKey(0)
    k1, k2 = jax.random.split(key)

    mean = jnp.asarray(_MEAN, dtype=jnp.float32)
    std = jnp.asarray(_STD, dtype=jnp.float32)

    # Small path (single whole-tensor block).
    N, C, H, W = 2, 9, 16, 16   # C=9 fixed by the default mean/std lists
    images = jax.random.uniform(k1, (N, C, H, W), dtype=jnp.float32)
    out, sizes = normalizer_forward(images, mean, std)
    out = jax.block_until_ready(out)

    ref = (images - mean.reshape(1, C, 1, 1)) / std.reshape(1, C, 1, 1)
    assert out.shape == (N, C, H, W)
    assert out.dtype == jnp.float32
    assert sizes == [(H, W)] * N
    assert jnp.allclose(out, ref, atol=1e-5, rtol=1e-5)

    # Tiled large path (forced with a tiny budget -> grid=(1, 16), T=256).
    images2 = jax.random.uniform(k2, (1, C, 64, 64), dtype=jnp.float32)
    out2, sizes2 = normalizer_forward(images2, mean, std,
                                      vmem_budget_bytes=64 * 1024)
    out2 = jax.block_until_ready(out2)
    ref2 = (images2 - mean.reshape(1, C, 1, 1)) / std.reshape(1, C, 1, 1)
    assert sizes2 == [(64, 64)]
    assert jnp.allclose(out2, ref2, atol=1e-5, rtol=1e-5)

    print("KERNEL_OK")
</pallas_src>

<mosaic_0001>
module attributes {stable_mosaic.version = 11 : i64} {
  func.func @_normalize_kernel(%arg0: i32, %arg1: memref<2x9x256xf32, #tpu.memory_space<vmem>>, %arg2: memref<1x9x1xf32, #tpu.memory_space<vmem>>, %arg3: memref<1x9x1xf32, #tpu.memory_space<vmem>>, %arg4: memref<2x9x256xf32, #tpu.memory_space<vmem>>) attributes {dimension_semantics = [#tpu.dimension_semantics<arbitrary>], iteration_bounds = array<i64: 1>, scalar_prefetch = 0 : i64, scratch_operands = 0 : i64, tpu.core_type = #tpu.core_type<tc>, window_params = [{pipeline_mode = #tpu.pipeline_mode<synchronous>, transform_indices = @transform_0, window_bounds = array<i64: 2, 9, 256>}, {pipeline_mode = #tpu.pipeline_mode<synchronous>, transform_indices = @transform_1, window_bounds = array<i64: 1, 9, 1>}, {pipeline_mode = #tpu.pipeline_mode<synchronous>, transform_indices = @transform_2, window_bounds = array<i64: 1, 9, 1>}, {pipeline_mode = #tpu.pipeline_mode<synchronous>, transform_indices = @transform_3, window_bounds = array<i64: 2, 9, 256>}]} {
    %c0 = arith.constant 0 : index
    %c0_0 = arith.constant 0 : index
    %c0_1 = arith.constant 0 : index
    %0 = vector.load %arg1[%c0, %c0_0, %c0_1] : memref<2x9x256xf32, #tpu.memory_space<vmem>>, vector<2x9x256xf32>
    %c0_2 = arith.constant 0 : index
    %c0_3 = arith.constant 0 : index
    %c0_4 = arith.constant 0 : index
    %1 = vector.load %arg2[%c0_2, %c0_3, %c0_4] : memref<1x9x1xf32, #tpu.memory_space<vmem>>, vector<1x9x1xf32>
    %2 = vector.broadcast %1 : vector<1x9x1xf32> to vector<2x9x256xf32>
    %3 = arith.subf %0, %2 : vector<2x9x256xf32>
    %c0_5 = arith.constant 0 : index
    %c0_6 = arith.constant 0 : index
    %c0_7 = arith.constant 0 : index
    %4 = vector.load %arg3[%c0_5, %c0_6, %c0_7] : memref<1x9x1xf32, #tpu.memory_space<vmem>>, vector<1x9x1xf32>
    %5 = vector.broadcast %4 : vector<1x9x1xf32> to vector<2x9x256xf32>
    %6 = arith.mulf %3, %5 : vector<2x9x256xf32>
    %c0_8 = arith.constant 0 : index
    %c0_9 = arith.constant 0 : index
    %c0_10 = arith.constant 0 : index
    %7 = vector.load %arg4[%c0_8, %c0_9, %c0_10] : memref<2x9x256xf32, #tpu.memory_space<vmem>>, vector<2x9x256xf32>
    tpu.vector_store %arg4[%c0_8, %c0_9, %c0_10], %6 {strides = array<i32>} : memref<2x9x256xf32, #tpu.memory_space<vmem>>, vector<2x9x256xf32>,
    return
  }
  func.func @transform_0(%arg0: i32) -> (i32, i32, i32) {
    %c0_i32 = arith.constant 0 : i32
    %c0_i32_0 = arith.constant 0 : i32
    %c0_i32_1 = arith.constant 0 : i32
    %c0_i32_2 = arith.constant 0 : i32
    return %c0_i32, %c0_i32_0, %c0_i32_1 : i32, i32, i32
  }
  func.func @transform_1(%arg0: i32) -> (i32, i32, i32) {
    %c0_i32 = arith.constant 0 : i32
    %c0_i32_0 = arith.constant 0 : i32
    %c0_i32_1 = arith.constant 0 : i32
    %c0_i32_2 = arith.constant 0 : i32
    return %c0_i32, %c0_i32_0, %c0_i32_1 : i32, i32, i32
  }
  func.func @transform_2(%arg0: i32) -> (i32, i32, i32) {
    %c0_i32 = arith.constant 0 : i32
    %c0_i32_0 = arith.constant 0 : i32
    %c0_i32_1 = arith.constant 0 : i32
    %c0_i32_2 = arith.constant 0 : i32
    return %c0_i32, %c0_i32_0, %c0_i32_1 : i32, i32, i32
  }
  func.func @transform_3(%arg0: i32) -> (i32, i32, i32) {
    %c0_i32 = arith.constant 0 : i32
    %c0_i32_0 = arith.constant 0 : i32
    %c0_i32_1 = arith.constant 0 : i32
    %c0_i32_2 = arith.constant 0 : i32
    return %c0_i32, %c0_i32_0, %c0_i32_1 : i32, i32, i32
  }
}

</mosaic_0001>

<llo_original>
// kernel: tpu_custom_call.1
$region0: #{tpu_custom_call.1}
  #allocation0 [shape = 'u32[]', space=smem, size = 0x4, offset = 0x4, fixed_abs, tag = 'smem constant byte address 0x4 - core index']
  #allocation1 [shape = 'u32[144,128]{1,0:T(1,128)}', space=vmem, size = 0x12000, scoped, tag = 'internal scratch']
  %s0 = inlined_call_operand.vmem [shape: f32[2,9,256], index: 0, kind: input, shape index: {}, may-alias: {0,3}]
  %s1 = inlined_call_operand.vmem [shape: f32[1,9,1], index: 1, kind: input, shape index: {}]
  %s2 = inlined_call_operand.vmem [shape: f32[1,9,1], index: 2, kind: input, shape index: {}]
  %s3 = inlined_call_operand.vmem [shape: f32[2,9,256], index: 3, kind: output, shape index: {}, may-alias: {0,3}]
  %s4 = sld [smem:[#allocation0]]
  $region22: #{tpu_custom_call.1} parent=0
    _
  %s6 = ssub.s32 1, %s4
  %s7 = scalar_select 0, %s6, %s4
  // Predicated region
  $region2: #{tpu_custom_call.1} parent=0 // pred_check
    _
  $region3: #{tpu_custom_call.1} parent=0 // pred_check_branch
    %9 = sbr.rel (0) target = $region5
  $region4: #{tpu_custom_call.1} parent=0 // pred_region
    _
  $region5: #{tpu_custom_call.1} parent=0 // pred_fallthru
    _
  // Predicated region
  $region6: #{tpu_custom_call.1} parent=0 // pred_check
    _
  $region7: #{tpu_custom_call.1} parent=0 // pred_check_branch
    %11 = sbr.rel (0) target = $region9
  $region8: #{tpu_custom_call.1} parent=0 // pred_region
    _
  $region9: #{tpu_custom_call.1} parent=0 // pred_fallthru
    _
  // Predicated region
  $region10: #{tpu_custom_call.1} parent=0 // pred_check
    _
  $region11: #{tpu_custom_call.1} parent=0 // pred_check_branch
    %13 = sbr.rel (0) target = $region13
  $region12: #{tpu_custom_call.1} parent=0 // pred_region
    _
  $region13: #{tpu_custom_call.1} parent=0 // pred_fallthru
    _
  %v14 = vld [vmem:[%s0] sm:$0xff]
  %v15 = vld [vmem:[%s0 + $0x8] sm:$0xff]
  %v16 = vld [vmem:[%s0 + $0x10] sm:$0x1]
  %v17 = vld [vmem:[%s0 + $0x18] sm:$0x1]
  %v18 = vld [vmem:[%s0 + $0x20] sm:$0xff]
  %v19 = vld [vmem:[%s0 + $0x28] sm:$0xff]
  %v20 = vld [vmem:[%s0 + $0x30] sm:$0x1]
  %v21 = vld [vmem:[%s0 + $0x38] sm:$0x1]
  %v22 = vld [vmem:[%s1] sm:$0xff]
  %v23 = vld [vmem:[%s1 + $0x8] sm:$0x1]
  %25 = vset.pattern.permute.xlu0 0
  %26 = vperm.xlu0 %25, %v22
  %v27 = vpop.permute.xlu0 %26
  %30 = vset.pattern.permute.xlu0 0
  %31 = vperm.xlu0 %30, %v23
  %v32 = vpop.permute.xlu0 %31
  %v34 = vsub.f32 %v14, %v27
  %v35 = vsub.f32 %v15, %v27
  %v36 = vsub.f32 %v16, %v32
  %v37 = vsub.f32 %v17, %v32
  %v38 = vsub.f32 %v18, %v27
  %v39 = vsub.f32 %v19, %v27
  %v40 = vsub.f32 %v20, %v32
  %v41 = vsub.f32 %v21, %v32
  %v42 = vld [vmem:[%s2] sm:$0xff]
  %v43 = vld [vmem:[%s2 + $0x8] sm:$0x1]
  %45 = vset.pattern.permute.xlu0 0
  %46 = vperm.xlu0 %45, %v42
  %v47 = vpop.permute.xlu0 %46
  %50 = vset.pattern.permute.xlu0 0
  %51 = vperm.xlu0 %50, %v43
  %v52 = vpop.permute.xlu0 %51
  %v54 = vmul.f32 %v34, %v47
  %v55 = vmul.f32 %v35, %v47
  %v56 = vmul.f32 %v36, %v52
  %v57 = vmul.f32 %v37, %v52
  %v58 = vmul.f32 %v38, %v47
  %v59 = vmul.f32 %v39, %v47
  %v60 = vmul.f32 %v40, %v52
  %v61 = vmul.f32 %v41, %v52
  %62 = vst [vmem:[%s3] sm:$0xff] %v54
  %63 = vst [vmem:[%s3 + $0x8] sm:$0xff] %v55
  %64 = vst [vmem:[%s3 + $0x10] sm:$0x1] %v56
  %65 = vst [vmem:[%s3 + $0x18] sm:$0x1] %v57
  %66 = vst [vmem:[%s3 + $0x20] sm:$0xff] %v58
  %67 = vst [vmem:[%s3 + $0x28] sm:$0xff] %v59
  %68 = vst [vmem:[%s3 + $0x30] sm:$0x1] %v60
  %69 = vst [vmem:[%s3 + $0x38] sm:$0x1] %v61
  // Predicated region
  $region14: #{tpu_custom_call.1} parent=0 // pred_check
    _
  $region15: #{tpu_custom_call.1} parent=0 // pred_check_branch
    %71 = sbr.rel (0) target = $region17
  $region16: #{tpu_custom_call.1} parent=0 // pred_region
    _
  $region17: #{tpu_custom_call.1} parent=0 // pred_fallthru
    _
  // Predicated region
  $region18: #{tpu_custom_call.1} parent=0 // pred_check
    _
  $region19: #{tpu_custom_call.1} parent=0 // pred_check_branch
    %73 = sbr.rel (0) target = $region21
  $region20: #{tpu_custom_call.1} parent=0 // pred_region
    _
  $region21: #{tpu_custom_call.1} parent=0 // pred_fallthru
    _

</llo_original>
